<compile_context>
chip_gen: v7x
topology: tpu7x:2x2x1
jax: 0.10.0
libtpu: 0.0.40
codegen_flags: <defaults>
</compile_context>

<pallas_src>
import functools

import jax
import jax.numpy as jnp
from jax.experimental import pallas as pl
from jax.experimental.pallas import tpu as pltpu

_LANE = 128
_SUBLANE = 8
_MAX_TILE_B = 256   # cap per-tile rows: VMEM-safe on v5e (16 MiB scoped default)

_ACTIVATIONS = {
    "relu": lambda v: jnp.maximum(v, 0.0),
    "sigmoid": jax.nn.sigmoid,
    "tanh": jnp.tanh,
}


def _round_up(x, m):
    return (x + m - 1) // m * m


def _net_kernel(x_ref, w1_ref, b1_ref, w2_ref, b2_ref, w3_ref, b3_ref, out_ref,
                *, activation):
    """One batch tile of the fused forward pass.

    x is (tile_b, feat) f32, unpadded in the lane dim; weights are lane-padded to
    128 and VMEM-resident across grid steps; output tile is lane-dense bf16.
    """
    act = _ACTIVATIONS[activation]
    x = x_ref[...]  # f32 [tile_b, feat]

    # fc1 + activation (f32 MXU accumulate; K=feat is masked by Mosaic)
    h1 = act(jnp.dot(x, w1_ref[...], preferred_element_type=jnp.float32)
             + b1_ref[...])

    # fc2 + activation
    h2 = act(jnp.dot(h1, w2_ref[...], preferred_element_type=jnp.float32)
             + b2_ref[...])

    # TODO(synk): nn.Dropout(0.2) (training mode) is omitted; in eval mode dropout
    # is identity, which is what this kernel reproduces.

    # fc3. Padded output lanes already hold -1e30 via b3's padding (W3's padded
    # columns are zero), so no in-kernel masking is needed before log_softmax.
    logits = (jnp.dot(h2, w3_ref[...], preferred_element_type=jnp.float32)
              + b3_ref[...])

    # Numerically stable log_softmax over the last axis.
    m = jnp.max(logits, axis=-1, keepdims=True)
    shifted = logits - m
    lse = jnp.log(jnp.sum(jnp.exp(shifted), axis=-1, keepdims=True))
    out_ref[...] = (shifted - lse).astype(out_ref.dtype)


def prepare_params(w1, b1, w2, b2, w3, b3):
    """One-time lane-padding of the Linear parameters (hoisted out of the forward).

    Returns (padded_params, out_size). Keep the result and reuse it across calls.
    """
    feat, hidden = w1.shape
    out_size = w3.shape[1]
    h_p = _round_up(hidden, _LANE)
    o_p = _round_up(out_size, _LANE)

    w1_p = jnp.pad(w1, ((0, 0), (0, h_p - hidden)))           # K dim (feat) unpadded
    b1_p = jnp.pad(b1, ((0, 0), (0, h_p - hidden)))
    w2_p = jnp.pad(w2, ((0, h_p - hidden), (0, h_p - hidden)))
    b2_p = jnp.pad(b2, ((0, 0), (0, h_p - hidden)))
    w3_p = jnp.pad(w3, ((0, h_p - hidden), (0, o_p - out_size)))
    # Large-negative (finite) bias in padded output lanes -> those logits are
    # -1e30 and never affect the log_softmax max/sum. No NaN risk (no -inf).
    b3_p = jnp.pad(b3, ((0, 0), (0, o_p - out_size)), constant_values=-1e30)
    return (w1_p, b1_p, w2_p, b2_p, w3_p, b3_p), out_size


def _choose_tiling(batch):
    """Pick (tile_b, padded_batch). Aim for >=2 grid steps (v7x has 2 TCs) once
    there is enough work, capped at 256 rows/tile (v5e scoped-VMEM safe)."""
    b_aligned = _round_up(batch, _SUBLANE)
    if b_aligned <= _SUBLANE:
        tile_b = b_aligned
    else:
        tile_b = min(_MAX_TILE_B, _round_up(pl.cdiv(b_aligned, 2), _SUBLANE))
    b_pad = _round_up(batch, tile_b)
    return tile_b, b_pad


@functools.partial(jax.jit, static_argnames=("out_size", "activation"))
def net_forward(x, params, *, out_size, activation="relu"):
    """x: [B, F] f32 (unpadded); params: output of prepare_params.

    Returns [B, out_size] f32 log-probabilities.
    """
    w1_p, b1_p, w2_p, b2_p, w3_p, b3_p = params
    batch, feat = x.shape
    h_p = w1_p.shape[1]
    o_p = w3_p.shape[1]

    tile_b, b_pad = _choose_tiling(batch)
    if b_pad != batch:
        x = jnp.pad(x, ((0, b_pad - batch), (0, 0)))   # batch-dim pad only (tiny)

    grid = (b_pad // tile_b,)

    out_padded = pl.pallas_call(
        functools.partial(_net_kernel, activation=activation),
        # bf16 output halves the dominant per-tile HBM write stream; sliced and
        # upcast in the wrapper.
        out_shape=jax.ShapeDtypeStruct((b_pad, o_p), jnp.bfloat16),
        grid=grid,
        in_specs=[
            # x: tiled over batch, last dim left at `feat` (== full array dim).
            pl.BlockSpec((tile_b, feat), lambda i: (i, 0)),
            pl.BlockSpec((feat, h_p), lambda i: (0, 0)),   # W1: VMEM-resident
            pl.BlockSpec((1, h_p), lambda i: (0, 0)),      # b1: resident
            pl.BlockSpec((h_p, h_p), lambda i: (0, 0)),    # W2: resident
            pl.BlockSpec((1, h_p), lambda i: (0, 0)),      # b2: resident
            pl.BlockSpec((h_p, o_p), lambda i: (0, 0)),    # W3: resident
            pl.BlockSpec((1, o_p), lambda i: (0, 0)),      # b3: resident (-1e30 pad)
        ],
        out_specs=pl.BlockSpec((tile_b, o_p), lambda i: (i, 0)),
        compiler_params=pltpu.CompilerParams(
            # Batch tiles are independent -> shard across v7x's 2 TensorCores.
            dimension_semantics=("parallel",)),
    )(x, w1_p, b1_p, w2_p, b2_p, w3_p, b3_p)

    return out_padded[:batch, :out_size].astype(jnp.float32)


def init_params(key, input_size, hidden_size, output_size):
    """Deterministic init mimicking torch.nn.Linear's U(-1/sqrt(fan_in), 1/sqrt(fan_in))."""
    ks = jax.random.split(key, 6)

    def linear(kw, kb, fan_in, fan_out):
        bound = 1.0 / jnp.sqrt(jnp.float32(fan_in))
        w = jax.random.uniform(kw, (fan_in, fan_out), jnp.float32, -bound, bound)
        b = jax.random.uniform(kb, (1, fan_out), jnp.float32, -bound, bound)
        return w, b

    w1, b1 = linear(ks[0], ks[1], input_size, hidden_size)
    w2, b2 = linear(ks[2], ks[3], hidden_size, hidden_size)
    w3, b3 = linear(ks[4], ks[5], hidden_size, output_size)
    return w1, b1, w2, b2, w3, b3


def reference_forward(x, w1, b1, w2, b2, w3, b3):
    """Pure-JAX f32 reference matching the PyTorch module (eval mode, relu)."""
    h1 = jnp.maximum(x @ w1 + b1, 0.0)
    h2 = jnp.maximum(h1 @ w2 + b2, 0.0)
    logits = h2 @ w3 + b3
    return jax.nn.log_softmax(logits, axis=-1)


if __name__ == "__main__":
    # Small shapes consistent with the module: tabular features -> MLP classifier.
    batch = 8
    input_size = 7       # number of admission features
    hidden_size = 32
    output_size = 4      # number of unique 'Admit_Probability' classes

    key = jax.random.PRNGKey(0)
    k_x, k_p = jax.random.split(key)

    x = jax.random.normal(k_x, (batch, input_size), dtype=jnp.float32)
    raw_params = init_params(k_p, input_size, hidden_size, output_size)

    # One-time parameter prep (padding hoisted out of the per-call forward path).
    padded_params, out_size = prepare_params(*raw_params)

    out = net_forward(x, padded_params, out_size=out_size, activation="relu")
    jax.block_until_ready(out)

    assert out.shape == (batch, output_size)

    # Sanity: log_softmax rows should exponentiate-sum to ~1 (bf16 output store).
    row_sums = jnp.sum(jnp.exp(out), axis=-1)
    assert bool(jnp.all(jnp.abs(row_sums - 1.0) < 2e-2))

    # Compare against the f32 pure-JAX reference (only the bf16 output round-trip
    # differs; matmuls are f32).
    ref = reference_forward(x, *raw_params)
    assert bool(jnp.max(jnp.abs(out - ref)) < 5e-2)

    print("KERNEL_OK")
</pallas_src>

<mosaic_0001>
module attributes {stable_mosaic.version = 11 : i64} {
  func.func @_net_kernel(%arg0: i32, %arg1: memref<8x7xf32, #tpu.memory_space<vmem>>, %arg2: memref<7x128xf32, #tpu.memory_space<vmem>>, %arg3: memref<1x128xf32, #tpu.memory_space<vmem>>, %arg4: memref<128x128xf32, #tpu.memory_space<vmem>>, %arg5: memref<1x128xf32, #tpu.memory_space<vmem>>, %arg6: memref<128x128xf32, #tpu.memory_space<vmem>>, %arg7: memref<1x128xf32, #tpu.memory_space<vmem>>, %arg8: memref<8x128xbf16, #tpu.memory_space<vmem>>) attributes {dimension_semantics = [#tpu.dimension_semantics<parallel>], iteration_bounds = array<i64: 1>, scalar_prefetch = 0 : i64, scratch_operands = 0 : i64, tpu.core_type = #tpu.core_type<tc>, window_params = [{transform_indices = @transform_0, window_bounds = array<i64: 8, 7>}, {pipeline_mode = #tpu.pipeline_mode<synchronous>, transform_indices = @transform_1, window_bounds = array<i64: 7, 128>}, {pipeline_mode = #tpu.pipeline_mode<synchronous>, transform_indices = @transform_2, window_bounds = array<i64: 1, 128>}, {pipeline_mode = #tpu.pipeline_mode<synchronous>, transform_indices = @transform_3, window_bounds = array<i64: 128, 128>}, {pipeline_mode = #tpu.pipeline_mode<synchronous>, transform_indices = @transform_4, window_bounds = array<i64: 1, 128>}, {pipeline_mode = #tpu.pipeline_mode<synchronous>, transform_indices = @transform_5, window_bounds = array<i64: 128, 128>}, {pipeline_mode = #tpu.pipeline_mode<synchronous>, transform_indices = @transform_6, window_bounds = array<i64: 1, 128>}, {transform_indices = @transform_7, window_bounds = array<i64: 8, 128>}]} {
    %c0 = arith.constant 0 : index
    %c0_0 = arith.constant 0 : index
    %0 = vector.load %arg1[%c0, %c0_0] : memref<8x7xf32, #tpu.memory_space<vmem>>, vector<8x7xf32>
    %c0_1 = arith.constant 0 : index
    %c0_2 = arith.constant 0 : index
    %1 = vector.load %arg2[%c0_1, %c0_2] : memref<7x128xf32, #tpu.memory_space<vmem>>, vector<7x128xf32>
    %cst = arith.constant dense<0.000000e+00> : vector<8x128xf32>
    %2 = tpu.matmul %0, %1, %cst {dimension_numbers = #tpu.dot_dimension_numbers<[1], [0], [0], [1], [0, 0, 1, 1], [], []>} : vector<8x7xf32>, vector<7x128xf32>, vector<8x128xf32> -> vector<8x128xf32>
    %c0_3 = arith.constant 0 : index
    %c0_4 = arith.constant 0 : index
    %3 = vector.load %arg3[%c0_3, %c0_4] : memref<1x128xf32, #tpu.memory_space<vmem>>, vector<1x128xf32>
    %4 = vector.broadcast %3 : vector<1x128xf32> to vector<8x128xf32>
    %5 = arith.addf %2, %4 : vector<8x128xf32>
    %cst_5 = arith.constant 0.000000e+00 : f32
    %6 = vector.broadcast %cst_5 : f32 to vector<8x128xf32>
    %7 = arith.maximumf %5, %6 : vector<8x128xf32>
    %c0_6 = arith.constant 0 : index
    %c0_7 = arith.constant 0 : index
    %8 = vector.load %arg4[%c0_6, %c0_7] : memref<128x128xf32, #tpu.memory_space<vmem>>, vector<128x128xf32>
    %cst_8 = arith.constant dense<0.000000e+00> : vector<8x128xf32>
    %9 = tpu.matmul %7, %8, %cst_8 {dimension_numbers = #tpu.dot_dimension_numbers<[1], [0], [0], [1], [0, 0, 1, 1], [], []>} : vector<8x128xf32>, vector<128x128xf32>, vector<8x128xf32> -> vector<8x128xf32>
    %c0_9 = arith.constant 0 : index
    %c0_10 = arith.constant 0 : index
    %10 = vector.load %arg5[%c0_9, %c0_10] : memref<1x128xf32, #tpu.memory_space<vmem>>, vector<1x128xf32>
    %11 = vector.broadcast %10 : vector<1x128xf32> to vector<8x128xf32>
    %12 = arith.addf %9, %11 : vector<8x128xf32>
    %cst_11 = arith.constant 0.000000e+00 : f32
    %13 = vector.broadcast %cst_11 : f32 to vector<8x128xf32>
    %14 = arith.maximumf %12, %13 : vector<8x128xf32>
    %c0_12 = arith.constant 0 : index
    %c0_13 = arith.constant 0 : index
    %15 = vector.load %arg6[%c0_12, %c0_13] : memref<128x128xf32, #tpu.memory_space<vmem>>, vector<128x128xf32>
    %cst_14 = arith.constant dense<0.000000e+00> : vector<8x128xf32>
    %16 = tpu.matmul %14, %15, %cst_14 {dimension_numbers = #tpu.dot_dimension_numbers<[1], [0], [0], [1], [0, 0, 1, 1], [], []>} : vector<8x128xf32>, vector<128x128xf32>, vector<8x128xf32> -> vector<8x128xf32>
    %c0_15 = arith.constant 0 : index
    %c0_16 = arith.constant 0 : index
    %17 = vector.load %arg7[%c0_15, %c0_16] : memref<1x128xf32, #tpu.memory_space<vmem>>, vector<1x128xf32>
    %18 = vector.broadcast %17 : vector<1x128xf32> to vector<8x128xf32>
    %19 = arith.addf %16, %18 : vector<8x128xf32>
    %cst_17 = arith.constant dense<0xFF800000> : vector<8xf32>
    %20 = vector.multi_reduction <maximumf>, %19, %cst_17 [1] : vector<8x128xf32> to vector<8xf32>
    %21 = vector.shape_cast %20 : vector<8xf32> to vector<8x1xf32>
    %22 = vector.broadcast %21 : vector<8x1xf32> to vector<8x128xf32>
    %23 = arith.subf %19, %22 : vector<8x128xf32>
    %24 = math.exp %23 : vector<8x128xf32>
    %cst_18 = arith.constant dense<0.000000e+00> : vector<8xf32>
    %25 = vector.multi_reduction <add>, %24, %cst_18 [1] : vector<8x128xf32> to vector<8xf32>
    %26 = vector.shape_cast %25 : vector<8xf32> to vector<8x1xf32>
    %27 = math.log %26 : vector<8x1xf32>
    %28 = vector.broadcast %27 : vector<8x1xf32> to vector<8x128xf32>
    %29 = arith.subf %23, %28 : vector<8x128xf32>
    %30 = arith.truncf %29 : vector<8x128xf32> to vector<8x128xbf16>
    %c0_19 = arith.constant 0 : index
    %c0_20 = arith.constant 0 : index
    %31 = vector.load %arg8[%c0_19, %c0_20] : memref<8x128xbf16, #tpu.memory_space<vmem>>, vector<8x128xbf16>
    tpu.vector_store %arg8[%c0_19, %c0_20], %30 {strides = array<i32>} : memref<8x128xbf16, #tpu.memory_space<vmem>>, vector<8x128xbf16>,
    return
  }
  func.func @transform_0(%arg0: i32) -> (i32, i32) {
    %c0_i32 = arith.constant 0 : i32
    %c0_i32_0 = arith.constant 0 : i32
    return %arg0, %c0_i32 : i32, i32
  }
  func.func @transform_1(%arg0: i32) -> (i32, i32) {
    %c0_i32 = arith.constant 0 : i32
    %c0_i32_0 = arith.constant 0 : i32
    %c0_i32_1 = arith.constant 0 : i32
    return %c0_i32, %c0_i32_0 : i32, i32
  }
  func.func @transform_2(%arg0: i32) -> (i32, i32) {
    %c0_i32 = arith.constant 0 : i32
    %c0_i32_0 = arith.constant 0 : i32
    %c0_i32_1 = arith.constant 0 : i32
    return %c0_i32, %c0_i32_0 : i32, i32
  }
  func.func @transform_3(%arg0: i32) -> (i32, i32) {
    %c0_i32 = arith.constant 0 : i32
    %c0_i32_0 = arith.constant 0 : i32
    %c0_i32_1 = arith.constant 0 : i32
    return %c0_i32, %c0_i32_0 : i32, i32
  }
  func.func @transform_4(%arg0: i32) -> (i32, i32) {
    %c0_i32 = arith.constant 0 : i32
    %c0_i32_0 = arith.constant 0 : i32
    %c0_i32_1 = arith.constant 0 : i32
    return %c0_i32, %c0_i32_0 : i32, i32
  }
  func.func @transform_5(%arg0: i32) -> (i32, i32) {
    %c0_i32 = arith.constant 0 : i32
    %c0_i32_0 = arith.constant 0 : i32
    %c0_i32_1 = arith.constant 0 : i32
    return %c0_i32, %c0_i32_0 : i32, i32
  }
  func.func @transform_6(%arg0: i32) -> (i32, i32) {
    %c0_i32 = arith.constant 0 : i32
    %c0_i32_0 = arith.constant 0 : i32
    %c0_i32_1 = arith.constant 0 : i32
    return %c0_i32, %c0_i32_0 : i32, i32
  }
  func.func @transform_7(%arg0: i32) -> (i32, i32) {
    %c0_i32 = arith.constant 0 : i32
    %c0_i32_0 = arith.constant 0 : i32
    return %arg0, %c0_i32 : i32, i32
  }
}

</mosaic_0001>

<llo_original>
// kernel: net_forward.1
$region0: #{net_forward.1}
  #allocation0 [shape = 'u32[]', space=smem, size = 0x4, offset = 0x4, fixed_abs, tag = 'smem constant byte address 0x4 - core index']
  #allocation1 [shape = 'u32[144,128]{1,0:T(1,128)}', space=vmem, size = 0x12000, scoped, tag = 'internal scratch']
  %s0 = inlined_call_operand.hbm [shape: f32[8,7], index: 0, kind: input, shape index: {}]
  %s1 = inlined_call_operand.hbm [shape: f32[7,128], index: 1, kind: input, shape index: {}]
  %s2 = inlined_call_operand.vmem [shape: f32[1,128], index: 2, kind: input, shape index: {}]
  %s3 = inlined_call_operand.hbm [shape: f32[128,128], index: 3, kind: input, shape index: {}]
  %s4 = inlined_call_operand.vmem [shape: f32[1,128], index: 4, kind: input, shape index: {}]
  %s5 = inlined_call_operand.hbm [shape: f32[128,128], index: 5, kind: input, shape index: {}]
  %s6 = inlined_call_operand.vmem [shape: f32[1,128], index: 6, kind: input, shape index: {}]
  %s7 = inlined_call_operand.vmem [shape: bf16[8,128], index: 7, kind: output, shape index: {}]
  %s8 = sld [smem:[#allocation0]]
  $region54: #{net_forward.1} parent=0
    _
  %s10 = ssub.s32 1, %s8
  %s11 = scalar_select 0, %s10, %s8
  $region1: #{net_forward.1} parent=0
    #allocation2 [shape = 'u8[4096]{0}', space=vmem, size = 0x1000, scoped, tag = 'input window, operand 0, single buffered']
    #allocation3 [shape = 's32[1]{0}', space=sflag, size = 0x4, scoped, tag = 'scoped memory for net_forward.1']
    #allocation4 [shape = 'u8[4096]{0}', space=vmem, size = 0x1000, scoped, tag = 'input window, operand 1, single buffered']
    #allocation5 [shape = 's32[1]{0}', space=sflag, size = 0x4, scoped, tag = 'scoped memory for net_forward.1']
    #allocation6 [shape = 'u8[65536]{0}', space=vmem, size = 0x10000, scoped, tag = 'input window, operand 3, single buffered']
    #allocation7 [shape = 'u8[65536]{0}', space=vmem, size = 0x10000, scoped, tag = 'input window, operand 5, single buffered']
    #allocation8 [shape = 's32[1]{0}', space=sflag, size = 0x4, scoped, tag = 'scoped memory for net_forward.1']
    %12 = vsyncpa [#allocation3], 0
    %13 = vsyncpa [#allocation5], 0
    %14 = vsyncpa [#allocation8], 0
    // Predicated region
    $region2: #{net_forward.1} parent=1 // pred_check
      _
    $region3: #{net_forward.1} parent=1 // pred_check_branch
      %16 = sbr.rel (0) target = $region5
    $region4: #{net_forward.1} parent=1 // pred_region
      %s18 = ssub.s32 128, 128
      %19 = vsyncadd [#allocation3], %s18
      %s21 = sshll.u32 [#allocation2], 4
      %s22 = int_to_ptr.vmem [resolvable:$true] %s21
      %24 = dma.hbm_to_vmem [thread:$0]  %s0, 128, %s22, [#allocation3]
    $region5: #{net_forward.1} parent=1 // pred_fallthru
      _
    // Predicated region
    $region6: #{net_forward.1} parent=1 // pred_check
      _
    $region7: #{net_forward.1} parent=1 // pred_check_branch
      %26 = sbr.rel (0) target = $region9
    $region8: #{net_forward.1} parent=1 // pred_region
      %s28 = ssub.s32 128, 128
      %29 = vsyncadd [#allocation5], %s28
      %s31 = sshll.u32 [#allocation4], 4
      %s32 = int_to_ptr.vmem [resolvable:$true] %s31
      %34 = dma.hbm_to_vmem [thread:$0]  %s1, 128, %s32, [#allocation5]
    $region9: #{net_forward.1} parent=1 // pred_fallthru
      _
    // Predicated region
    $region10: #{net_forward.1} parent=1 // pred_check
      _
    $region11: #{net_forward.1} parent=1 // pred_check_branch
      %36 = sbr.rel (0) target = $region13
    $region12: #{net_forward.1} parent=1 // pred_region
      _
    $region13: #{net_forward.1} parent=1 // pred_fallthru
      _
    // Predicated region
    $region14: #{net_forward.1} parent=1 // pred_check
      _
    $region15: #{net_forward.1} parent=1 // pred_check_branch
      %38 = sbr.rel (0) target = $region17
    $region16: #{net_forward.1} parent=1 // pred_region
      %s40 = ssub.s32 2048, 2048
      %41 = vsyncadd [#allocation5], %s40
      %s42 = sshll.u32 [#allocation6], 4
      %s43 = int_to_ptr.vmem [resolvable:$true] %s42
      %48 = dma.hbm_to_vmem [thread:$0]  %s3, 2048, %s43, [#allocation5], 128, 128, 8
    $region17: #{net_forward.1} parent=1 // pred_fallthru
      _
    // Predicated region
    $region18: #{net_forward.1} parent=1 // pred_check
      _
    $region19: #{net_forward.1} parent=1 // pred_check_branch
      %50 = sbr.rel (0) target = $region21
    $region20: #{net_forward.1} parent=1 // pred_region
      _
    $region21: #{net_forward.1} parent=1 // pred_fallthru
      _
    // Predicated region
    $region22: #{net_forward.1} parent=1 // pred_check
      _
    $region23: #{net_forward.1} parent=1 // pred_check_branch
      %52 = sbr.rel (0) target = $region25
    $region24: #{net_forward.1} parent=1 // pred_region
      %s54 = ssub.s32 2048, 2048
      %55 = vsyncadd [#allocation8], %s54
      %s56 = sshll.u32 [#allocation7], 4
      %s57 = int_to_ptr.vmem [resolvable:$true] %s56
      %62 = dma.hbm_to_vmem [thread:$0]  %s5, 2048, %s57, [#allocation8], 128, 128, 8
    $region25: #{net_forward.1} parent=1 // pred_fallthru
      _
    // Predicated region
    $region26: #{net_forward.1} parent=1 // pred_check
      _
    $region27: #{net_forward.1} parent=1 // pred_check_branch
      %64 = sbr.rel (0) target = $region29
    $region28: #{net_forward.1} parent=1 // pred_region
      _
    $region29: #{net_forward.1} parent=1 // pred_fallthru
      _
    // Predicated region
    $region30: #{net_forward.1} parent=1 // pred_check
      _
    $region31: #{net_forward.1} parent=1 // pred_check_branch
      %66 = sbr.rel (0) target = $region33
    $region32: #{net_forward.1} parent=1 // pred_region
      %67 = dma.done [#allocation3], 128
    $region33: #{net_forward.1} parent=1 // pred_fallthru
      _
    // Predicated region
    $region34: #{net_forward.1} parent=1 // pred_check
      _
    $region35: #{net_forward.1} parent=1 // pred_check_branch
      %69 = sbr.rel (0) target = $region37
    $region36: #{net_forward.1} parent=1 // pred_region
      %70 = dma.done [#allocation5], 128
    $region37: #{net_forward.1} parent=1 // pred_fallthru
      _
    // Predicated region
    $region38: #{net_forward.1} parent=1 // pred_check
      _
    $region39: #{net_forward.1} parent=1 // pred_check_branch
      %72 = sbr.rel (0) target = $region41
    $region40: #{net_forward.1} parent=1 // pred_region
      %73 = dma.done [#allocation5], 2048
    $region41: #{net_forward.1} parent=1 // pred_fallthru
      _
    // Predicated region
    $region42: #{net_forward.1} parent=1 // pred_check
      _
    $region43: #{net_forward.1} parent=1 // pred_check_branch
      %75 = sbr.rel (0) target = $region45
    $region44: #{net_forward.1} parent=1 // pred_region
      %76 = dma.done [#allocation8], 2048
    $region45: #{net_forward.1} parent=1 // pred_fallthru
      _
    %v77 = vld [vmem:[#allocation2] sm:$0xff]
    %v78 = vld [vmem:[#allocation4] sm:$0x7f]
    %v79 = vld [vmem:[%s2] sm:$0x1]
    %v81 = vlaneseq
    %v82 = vshrl.u32 %v81, 7
    %v83 = vsub.s32 0, %v82
    %v84 = vrot.slane %v79, %v83
    %vm86 = vcmask 56320
    %v88 = vsel %vm86, %v77, 0
    %vm90 = vcmask 1046528
    %v92 = vsel %vm90, %v78, 0
    %94 = vmatprep.subr.mxu0 0.0
    %95 = vmatpush1.msra.mxu0 %v92
    %96 = vmatprep.subr.mxu0 0.0
    %97 = vmatpush1.msra.mxu0 0.0
    %98 = vmatprep.subr.mxu0 0.0
    %99 = vmatpush1.msra.mxu0 0.0
    %100 = vmatprep.subr.mxu0 0.0
    %101 = vmatpush1.msra.mxu0 0.0
    %102 = vmatprep.subr.mxu0 0.0
    %103 = vmatpush1.msra.mxu0 0.0
    %104 = vmatprep.subr.mxu0 0.0
    %105 = vmatpush1.msra.mxu0 0.0
    %106 = vmatprep.subr.mxu0 0.0
    %107 = vmatpush1.msra.mxu0 0.0
    %108 = vmatprep.subr.mxu0 0.0
    %109 = vmatpush1.msra.mxu0 0.0
    %110 = vmatprep.subr.mxu0 0.0
    %111 = vmatpush1.msra.mxu0 0.0
    %112 = vmatprep.subr.mxu0 0.0
    %113 = vmatpush1.msra.mxu0 0.0
    %114 = vmatprep.subr.mxu0 0.0
    %115 = vmatpush1.msra.mxu0 0.0
    %116 = vmatprep.subr.mxu0 0.0
    %117 = vmatpush1.msra.mxu0 0.0
    %118 = vmatprep.subr.mxu0 0.0
    %119 = vmatpush1.msra.mxu0 0.0
    %120 = vmatprep.subr.mxu0 0.0
    %121 = vmatpush1.msra.mxu0 0.0
    %122 = vmatprep.subr.mxu0 0.0
    %123 = vmatpush1.msra.mxu0 0.0
    %124 = vmatprep.subr.mxu0 0.0
    %125 = vmatpush1.msra.mxu0 0.0
    %126 = vmatprep.subr.mxu0 0.0
    %127 = vmatpush1.msra.mxu0 0.0
    %128 = vmatprep.subr.mxu0 0.0
    %129 = vmatpush1.msra.mxu0 0.0
    %130 = vmatprep.subr.mxu0 0.0
    %131 = vmatpush1.msra.mxu0 0.0
    %132 = vmatprep.subr.mxu0 0.0
    %133 = vmatpush1.msra.mxu0 0.0
    %134 = vmatprep.subr.mxu0 0.0
    %135 = vmatpush1.msra.mxu0 0.0
    %136 = vmatprep.subr.mxu0 0.0
    %137 = vmatpush1.msra.mxu0 0.0
    %138 = vmatprep.subr.mxu0 0.0
    %139 = vmatpush1.msra.mxu0 0.0
    %140 = vmatprep.subr.mxu0 0.0
    %141 = vmatpush1.msra.mxu0 0.0
    %142 = vmatprep.subr.mxu0 0.0
    %143 = vmatpush1.msra.mxu0 0.0
    %144 = vmatprep.subr.mxu0 0.0
    %145 = vmatpush1.msra.mxu0 0.0
    %146 = vmatprep.subr.mxu0 0.0
    %147 = vmatpush1.msra.mxu0 0.0
    %148 = vmatprep.subr.mxu0 0.0
    %149 = vmatpush1.msra.mxu0 0.0
    %150 = vmatprep.subr.mxu0 0.0
    %151 = vmatpush1.msra.mxu0 0.0
    %152 = vmatprep.subr.mxu0 0.0
    %153 = vmatpush1.msra.mxu0 0.0
    %154 = vmatprep.subr.mxu0 0.0
    %155 = vmatpush1.msra.mxu0 0.0
    %156 = vmatprep.subr.mxu0 0.0
    %157 = vmatpush1.msra.mxu0 0.0
    %158 = vmatprep.mubr.f32.mxu0 0.0
    %159 = vmatmul.mubr.f32.gmra.mrb[0].mxu0 %v88
    %v160 = vpop.f32.mrb[0].mxu0
    %v161 = vadd.f32 %v84, %v160
    %v162 = vpop.f32.mrb[0].mxu0
    %163 = vdwg.mxu0
    %v164 = vmax.f32 %v161, 0.0
    %v165 = vld [vmem:[#allocation6] sm:$0xff]
    %v166 = vld [vmem:[#allocation6 + $0x8] sm:$0xff]
    %v167 = vld [vmem:[#allocation6 + $0x10] sm:$0xff]
    %v168 = vld [vmem:[#allocation6 + $0x18] sm:$0xff]
    %v169 = vld [vmem:[#allocation6 + $0x20] sm:$0xff]
    %v170 = vld [vmem:[#allocation6 + $0x28] sm:$0xff]
    %v171 = vld [vmem:[#allocation6 + $0x30] sm:$0xff]
    %v172 = vld [vmem:[#allocation6 + $0x38] sm:$0xff]
    %v173 = vld [vmem:[#allocation6 + $0x40] sm:$0xff]
    %v174 = vld [vmem:[#allocation6 + $0x48] sm:$0xff]
    %v175 = vld [vmem:[#allocation6 + $0x50] sm:$0xff]
    %v176 = vld [vmem:[#allocation6 + $0x58] sm:$0xff]
    %v177 = vld [vmem:[#allocation6 + $0x60] sm:$0xff]
    %v178 = vld [vmem:[#allocation6 + $0x68] sm:$0xff]
    %v179 = vld [vmem:[#allocation6 + $0x70] sm:$0xff]
    %v180 = vld [vmem:[#allocation6 + $0x78] sm:$0xff]
    %v181 = vld [vmem:[%s4] sm:$0x1]
    %v183 = vlaneseq
    %v184 = vshrl.u32 %v183, 7
    %v185 = vsub.s32 0, %v184
    %v186 = vrot.slane %v181, %v185
    %188 = vmatprep.subr.mxu0 0.0
    %189 = vmatpush1.msra.mxu0 %v165
    %190 = vmatprep.subr.mxu0 0.0
    %191 = vmatpush1.msra.mxu0 %v166
    %192 = vmatprep.subr.mxu0 0.0
    %193 = vmatpush1.msra.mxu0 %v167
    %194 = vmatprep.subr.mxu0 0.0
    %195 = vmatpush1.msra.mxu0 %v168
    %196 = vmatprep.subr.mxu0 0.0
    %197 = vmatpush1.msra.mxu0 %v169
    %198 = vmatprep.subr.mxu0 0.0
    %199 = vmatpush1.msra.mxu0 %v170
    %200 = vmatprep.subr.mxu0 0.0
    %201 = vmatpush1.msra.mxu0 %v171
    %202 = vmatprep.subr.mxu0 0.0
    %203 = vmatpush1.msra.mxu0 %v172
    %204 = vmatprep.subr.mxu0 0.0
    %205 = vmatpush1.msra.mxu0 %v173
    %206 = vmatprep.subr.mxu0 0.0
    %207 = vmatpush1.msra.mxu0 %v174
    %208 = vmatprep.subr.mxu0 0.0
    %209 = vmatpush1.msra.mxu0 %v175
    %210 = vmatprep.subr.mxu0 0.0
    %211 = vmatpush1.msra.mxu0 %v176
    %212 = vmatprep.subr.mxu0 0.0
    %213 = vmatpush1.msra.mxu0 %v177
    %214 = vmatprep.subr.mxu0 0.0
    %215 = vmatpush1.msra.mxu0 %v178
    %216 = vmatprep.subr.mxu0 0.0
    %217 = vmatpush1.msra.mxu0 %v179
    %218 = vmatprep.subr.mxu0 0.0
    %219 = vmatpush1.msra.mxu0 %v180
    %220 = vmatprep.subr.mxu0 0.0
    %221 = vmatpush1.msra.mxu0 0.0
    %222 = vmatprep.subr.mxu0 0.0
    %223 = vmatpush1.msra.mxu0 0.0
    %224 = vmatprep.subr.mxu0 0.0
    %225 = vmatpush1.msra.mxu0 0.0
    %226 = vmatprep.subr.mxu0 0.0
    %227 = vmatpush1.msra.mxu0 0.0
    %228 = vmatprep.subr.mxu0 0.0
    %229 = vmatpush1.msra.mxu0 0.0
    %230 = vmatprep.subr.mxu0 0.0
    %231 = vmatpush1.msra.mxu0 0.0
    %232 = vmatprep.subr.mxu0 0.0
    %233 = vmatpush1.msra.mxu0 0.0
    %234 = vmatprep.subr.mxu0 0.0
    %235 = vmatpush1.msra.mxu0 0.0
    %236 = vmatprep.subr.mxu0 0.0
    %237 = vmatpush1.msra.mxu0 0.0
    %238 = vmatprep.subr.mxu0 0.0
    %239 = vmatpush1.msra.mxu0 0.0
    %240 = vmatprep.subr.mxu0 0.0
    %241 = vmatpush1.msra.mxu0 0.0
    %242 = vmatprep.subr.mxu0 0.0
    %243 = vmatpush1.msra.mxu0 0.0
    %244 = vmatprep.subr.mxu0 0.0
    %245 = vmatpush1.msra.mxu0 0.0
    %246 = vmatprep.subr.mxu0 0.0
    %247 = vmatpush1.msra.mxu0 0.0
    %248 = vmatprep.subr.mxu0 0.0
    %249 = vmatpush1.msra.mxu0 0.0
    %250 = vmatprep.subr.mxu0 0.0
    %251 = vmatpush1.msra.mxu0 0.0
    %252 = vmatprep.mubr.f32.mxu0 0.0
    %253 = vmatmul.mubr.f32.gmra.mrb[0].mxu0 %v164
    %v254 = vpop.f32.mrb[0].mxu0
    %v255 = vadd.f32 %v186, %v254
    %v256 = vpop.f32.mrb[0].mxu0
    %257 = vdwg.mxu0
    %v258 = vmax.f32 %v255, 0.0
    %v259 = vld [vmem:[#allocation7] sm:$0xff]
    %v260 = vld [vmem:[#allocation7 + $0x8] sm:$0xff]
    %v261 = vld [vmem:[#allocation7 + $0x10] sm:$0xff]
    %v262 = vld [vmem:[#allocation7 + $0x18] sm:$0xff]
    %v263 = vld [vmem:[#allocation7 + $0x20] sm:$0xff]
    %v264 = vld [vmem:[#allocation7 + $0x28] sm:$0xff]
    %v265 = vld [vmem:[#allocation7 + $0x30] sm:$0xff]
    %v266 = vld [vmem:[#allocation7 + $0x38] sm:$0xff]
    %v267 = vld [vmem:[#allocation7 + $0x40] sm:$0xff]
    %v268 = vld [vmem:[#allocation7 + $0x48] sm:$0xff]
    %v269 = vld [vmem:[#allocation7 + $0x50] sm:$0xff]
    %v270 = vld [vmem:[#allocation7 + $0x58] sm:$0xff]
    %v271 = vld [vmem:[#allocation7 + $0x60] sm:$0xff]
    %v272 = vld [vmem:[#allocation7 + $0x68] sm:$0xff]
    %v273 = vld [vmem:[#allocation7 + $0x70] sm:$0xff]
    %v274 = vld [vmem:[#allocation7 + $0x78] sm:$0xff]
    %v275 = vld [vmem:[%s6] sm:$0x1]
    %v277 = vlaneseq
    %v278 = vshrl.u32 %v277, 7
    %v279 = vsub.s32 0, %v278
    %v280 = vrot.slane %v275, %v279
    %282 = vmatprep.subr.mxu0 0.0
    %283 = vmatpush1.msra.mxu0 %v259
    %284 = vmatprep.subr.mxu0 0.0
    %285 = vmatpush1.msra.mxu0 %v260
    %286 = vmatprep.subr.mxu0 0.0
    %287 = vmatpush1.msra.mxu0 %v261
    %288 = vmatprep.subr.mxu0 0.0
    %289 = vmatpush1.msra.mxu0 %v262
    %290 = vmatprep.subr.mxu0 0.0
    %291 = vmatpush1.msra.mxu0 %v263
    %292 = vmatprep.subr.mxu0 0.0
    %293 = vmatpush1.msra.mxu0 %v264
    %294 = vmatprep.subr.mxu0 0.0
    %295 = vmatpush1.msra.mxu0 %v265
    %296 = vmatprep.subr.mxu0 0.0
    %297 = vmatpush1.msra.mxu0 %v266
    %298 = vmatprep.subr.mxu0 0.0
    %299 = vmatpush1.msra.mxu0 %v267
    %300 = vmatprep.subr.mxu0 0.0
    %301 = vmatpush1.msra.mxu0 %v268
    %302 = vmatprep.subr.mxu0 0.0
    %303 = vmatpush1.msra.mxu0 %v269
    %304 = vmatprep.subr.mxu0 0.0
    %305 = vmatpush1.msra.mxu0 %v270
    %306 = vmatprep.subr.mxu0 0.0
    %307 = vmatpush1.msra.mxu0 %v271
    %308 = vmatprep.subr.mxu0 0.0
    %309 = vmatpush1.msra.mxu0 %v272
    %310 = vmatprep.subr.mxu0 0.0
    %311 = vmatpush1.msra.mxu0 %v273
    %312 = vmatprep.subr.mxu0 0.0
    %313 = vmatpush1.msra.mxu0 %v274
    %314 = vmatprep.subr.mxu0 0.0
    %315 = vmatpush1.msra.mxu0 0.0
    %316 = vmatprep.subr.mxu0 0.0
    %317 = vmatpush1.msra.mxu0 0.0
    %318 = vmatprep.subr.mxu0 0.0
    %319 = vmatpush1.msra.mxu0 0.0
    %320 = vmatprep.subr.mxu0 0.0
    %321 = vmatpush1.msra.mxu0 0.0
    %322 = vmatprep.subr.mxu0 0.0
    %323 = vmatpush1.msra.mxu0 0.0
    %324 = vmatprep.subr.mxu0 0.0
    %325 = vmatpush1.msra.mxu0 0.0
    %326 = vmatprep.subr.mxu0 0.0
    %327 = vmatpush1.msra.mxu0 0.0
    %328 = vmatprep.subr.mxu0 0.0
    %329 = vmatpush1.msra.mxu0 0.0
    %330 = vmatprep.subr.mxu0 0.0
    %331 = vmatpush1.msra.mxu0 0.0
    %332 = vmatprep.subr.mxu0 0.0
    %333 = vmatpush1.msra.mxu0 0.0
    %334 = vmatprep.subr.mxu0 0.0
    %335 = vmatpush1.msra.mxu0 0.0
    %336 = vmatprep.subr.mxu0 0.0
    %337 = vmatpush1.msra.mxu0 0.0
    %338 = vmatprep.subr.mxu0 0.0
    %339 = vmatpush1.msra.mxu0 0.0
    %340 = vmatprep.subr.mxu0 0.0
    %341 = vmatpush1.msra.mxu0 0.0
    %342 = vmatprep.subr.mxu0 0.0
    %343 = vmatpush1.msra.mxu0 0.0
    %344 = vmatprep.subr.mxu0 0.0
    %345 = vmatpush1.msra.mxu0 0.0
    %346 = vmatprep.mubr.f32.mxu0 0.0
    %347 = vmatmul.mubr.f32.gmra.mrb[0].mxu0 %v258
    %v348 = vpop.f32.mrb[0].mxu0
    %v349 = vadd.f32 %v280, %v348
    %v350 = vpop.f32.mrb[0].mxu0
    %351 = vdwg.mxu0
    %352 = vmax.xlane.f32.xlu0 %v349
    %v353 = vpop.xlane.xlu0 %352
    %v354 = vsub.f32 %v349, %v353
    %v355 = vmul.f32 %v354, 1.442695
    %v356 = vpow.pop %v355
    %357 = vadd.xlane.f32.xlu0 %v356
    %v358 = vpop.xlane.xlu0 %357
    %v359 = vlog2.pop %v358
    %v360 = vmul.f32 %v359, 0.6931472
    %v361 = vsub.f32 %v354, %v360
    %v362 = vpack.c.bf16 %v361, %v361
    %363 = vst [vmem:[%s7] sm:$0xf] %v362
    // Predicated region
    $region46: #{net_forward.1} parent=1 // pred_check
      _
    $region47: #{net_forward.1} parent=1 // pred_check_branch
      %365 = sbr.rel (0) target = $region49
    $region48: #{net_forward.1} parent=1 // pred_region
      _
    $region49: #{net_forward.1} parent=1 // pred_fallthru
      _
    // Predicated region
    $region50: #{net_forward.1} parent=1 // pred_check
      _
    $region51: #{net_forward.1} parent=1 // pred_check_branch
      %367 = sbr.rel (0) target = $region53
    $region52: #{net_forward.1} parent=1 // pred_region
      _
    $region53: #{net_forward.1} parent=1 // pred_fallthru
      _
    %368 = vsyncpa [#allocation3], 1
    %369 = vsyncpa [#allocation5], 1
    %370 = vsyncpa [#allocation8], 1

</llo_original>
